<compile_context>
chip_gen: v7x
topology: tpu7x:2x2x1
jax: 0.10.0
libtpu: 0.0.40
codegen_flags: <defaults>
</compile_context>

<pallas_src>
import functools

import jax
import jax.numpy as jnp
from jax.experimental import pallas as pl
from jax.experimental.pallas import tpu as pltpu


def _round_up(x, m):
    return ((x + m - 1) // m) * m


def relation_kernel(x_ref, w1_ref, b1_ref, w2_ref, b2_ref, o_ref):
    # x_ref:  (tm, Dp)  bf16/f32     w1_ref: (Dp, Hp) bf16/f32 (VMEM resident)
    # b1_ref: (1, Hp)   f32          w2_ref: (1, Hp)  f32 (fc2 weights as a lane row)
    # b2_ref: (1,)      f32 (SMEM)   o_ref:  (1, tm)  f32 (lane-dense output row)
    # fc1 on the MXU with f32 accumulation; bias + ReLU on the VPU in f32.
    h = jnp.dot(x_ref[...], w1_ref[...], preferred_element_type=jnp.float32)
    h = jnp.maximum(h + b1_ref[...], 0.0)
    # fc2 has output width 1 -> skip the MXU: VPU multiply + cross-lane reduce (XLU).
    z = jnp.sum(h * w2_ref[...], axis=-1) + b2_ref[0]            # (tm,)
    # One full lane-dense row per grid step -> unmasked lane stores.
    o_ref[...] = jax.nn.sigmoid(z)[None, :].astype(o_ref.dtype)


@functools.partial(jax.jit, static_argnames=("tm", "use_bf16"))
def relation_network(x, w1_t, b1, w2_t, b2, *, tm=512, use_bf16=True):
    """sigmoid(relu(x @ w1_t + b1) @ w2_t + b2). x: (N, D) -> (N, 1) (matches torch)."""
    N, D = x.shape
    Din, H = w1_t.shape
    assert Din == D and w2_t.shape == (H, 1) and b1.shape == (H,) and b2.shape == (1,)

    # Lane-align feature dims and pick a row tile that is a multiple of 128 so the
    # output rows are lane-dense; pad the batch to a whole number of tiles.
    Dp = _round_up(D, 128)
    Hp = _round_up(H, 128)
    tm = min(_round_up(tm, 128), _round_up(N, 128))
    Np = _round_up(N, tm)
    grid = Np // tm

    mxu_dtype = jnp.bfloat16 if use_bf16 else x.dtype
    x_p = jnp.zeros((Np, Dp), mxu_dtype).at[:N, :D].set(x.astype(mxu_dtype))
    w1_p = jnp.zeros((Dp, Hp), mxu_dtype).at[:D, :H].set(w1_t.astype(mxu_dtype))
    b1_p = jnp.zeros((1, Hp), jnp.float32).at[0, :H].set(b1.astype(jnp.float32))
    w2_p = jnp.zeros((1, Hp), jnp.float32).at[0, :H].set(w2_t[:, 0].astype(jnp.float32))
    b2_s = b2.astype(jnp.float32).reshape(1)

    out = pl.pallas_call(
        relation_kernel,
        out_shape=jax.ShapeDtypeStruct((grid, tm), jnp.float32),
        grid_spec=pltpu.PrefetchScalarGridSpec(
            num_scalar_prefetch=0,
            grid=(grid,),
            in_specs=[
                pl.BlockSpec((tm, Dp), lambda i: (i, 0)),            # x rows (pipelined)
                pl.BlockSpec((Dp, Hp), lambda i: (0, 0)),            # W1^T (VMEM resident)
                pl.BlockSpec((1, Hp), lambda i: (0, 0)),             # b1
                pl.BlockSpec((1, Hp), lambda i: (0, 0)),             # w2 as a lane row
                pl.BlockSpec(memory_space=pltpu.MemorySpace.SMEM),   # b2 scalar in SMEM
            ],
            out_specs=pl.BlockSpec((1, tm), lambda i: (i, 0)),       # lane-dense output rows
        ),
        compiler_params=pltpu.CompilerParams(
            dimension_semantics=("parallel",),   # shards the row loop across TCs on v7x
        ),
    )(x_p, w1_p, b1_p, w2_p, b2_s)

    return out.reshape(Np)[:N].reshape(N, 1).astype(x.dtype)


def init_params(key, input_size, hidden_size, dtype=jnp.float32):
    """PyTorch-style uniform(-1/sqrt(fan_in), 1/sqrt(fan_in)) init, stored as (in, out)."""
    k1, k2, k3, k4 = jax.random.split(key, 4)
    bound1 = 1.0 / jnp.sqrt(input_size)
    bound2 = 1.0 / jnp.sqrt(hidden_size)
    w1_t = jax.random.uniform(k1, (input_size, hidden_size), dtype, -bound1, bound1)
    b1 = jax.random.uniform(k2, (hidden_size,), dtype, -bound1, bound1)
    w2_t = jax.random.uniform(k3, (hidden_size, 1), dtype, -bound2, bound2)
    b2 = jax.random.uniform(k4, (1,), dtype, -bound2, bound2)
    return w1_t, b1, w2_t, b2


def relation_network_ref(x, w1_t, b1, w2_t, b2):
    h = jnp.maximum(x @ w1_t + b1, 0.0)
    return jax.nn.sigmoid(h @ w2_t + b2)


if __name__ == "__main__":
    input_size, hidden_size = 64, 32
    key = jax.random.PRNGKey(0)
    kx1, kx2, kp = jax.random.split(key, 3)
    w1_t, b1, w2_t, b2 = init_params(kp, input_size, hidden_size)

    # Small batch: single tile (grid=(1,)), pure f32 path, tight tolerance.
    N1 = 16
    x1 = jax.random.normal(kx1, (N1, input_size), jnp.float32)
    out1 = jax.block_until_ready(relation_network(x1, w1_t, b1, w2_t, b2, use_bf16=False))
    ref1 = relation_network_ref(x1, w1_t, b1, w2_t, b2)
    assert out1.shape == (N1, 1)
    assert jnp.allclose(out1, ref1, atol=1e-4, rtol=1e-4), "f32 path mismatch vs reference"

    # Ragged batch: multi-step grid (ceil(300/128)=3 tiles), bf16 MXU operands + f32 accum.
    N2 = 300
    x2 = jax.random.normal(kx2, (N2, input_size), jnp.float32)
    out2 = jax.block_until_ready(
        relation_network(x2, w1_t, b1, w2_t, b2, tm=128, use_bf16=True)
    )
    ref2 = relation_network_ref(x2, w1_t, b1, w2_t, b2)
    assert out2.shape == (N2, 1)
    assert jnp.allclose(out2, ref2, atol=5e-3, rtol=5e-3), "bf16 path mismatch vs reference"

    print("KERNEL_OK")
</pallas_src>

<mosaic_0001>
module attributes {stable_mosaic.version = 11 : i64} {
  func.func @relation_kernel(%arg0: i32, %arg1: memref<128x128xf32, #tpu.memory_space<vmem>>, %arg2: memref<128x128xf32, #tpu.memory_space<vmem>>, %arg3: memref<1x128xf32, #tpu.memory_space<vmem>>, %arg4: memref<1x128xf32, #tpu.memory_space<vmem>>, %arg5: memref<1xf32, #tpu.memory_space<smem>>, %arg6: memref<1x128xf32, #tpu.memory_space<vmem>>) attributes {dimension_semantics = [#tpu.dimension_semantics<parallel>], iteration_bounds = array<i64: 1>, scalar_prefetch = 0 : i64, scratch_operands = 0 : i64, tpu.core_type = #tpu.core_type<tc>, window_params = [{transform_indices = @transform_0, window_bounds = array<i64: 128, 128>}, {pipeline_mode = #tpu.pipeline_mode<synchronous>, transform_indices = @transform_1, window_bounds = array<i64: 128, 128>}, {pipeline_mode = #tpu.pipeline_mode<synchronous>, transform_indices = @transform_2, window_bounds = array<i64: 1, 128>}, {pipeline_mode = #tpu.pipeline_mode<synchronous>, transform_indices = @transform_3, window_bounds = array<i64: 1, 128>}, {transform_indices = @transform_4, window_bounds = array<i64: 1>}, {transform_indices = @transform_5, window_bounds = array<i64: 1, 128>}]} {
    %c0 = arith.constant 0 : index
    %c0_0 = arith.constant 0 : index
    %0 = vector.load %arg1[%c0, %c0_0] : memref<128x128xf32, #tpu.memory_space<vmem>>, vector<128x128xf32>
    %c0_1 = arith.constant 0 : index
    %c0_2 = arith.constant 0 : index
    %1 = vector.load %arg2[%c0_1, %c0_2] : memref<128x128xf32, #tpu.memory_space<vmem>>, vector<128x128xf32>
    %cst = arith.constant dense<0.000000e+00> : vector<128x128xf32>
    %2 = tpu.matmul %0, %1, %cst {dimension_numbers = #tpu.dot_dimension_numbers<[1], [0], [0], [1], [0, 0, 1, 1], [], []>} : vector<128x128xf32>, vector<128x128xf32>, vector<128x128xf32> -> vector<128x128xf32>
    %c0_3 = arith.constant 0 : index
    %c0_4 = arith.constant 0 : index
    %3 = vector.load %arg3[%c0_3, %c0_4] : memref<1x128xf32, #tpu.memory_space<vmem>>, vector<1x128xf32>
    %4 = vector.broadcast %3 : vector<1x128xf32> to vector<128x128xf32>
    %5 = arith.addf %2, %4 : vector<128x128xf32>
    %cst_5 = arith.constant 0.000000e+00 : f32
    %6 = vector.broadcast %cst_5 : f32 to vector<128x128xf32>
    %7 = arith.maximumf %5, %6 : vector<128x128xf32>
    %c0_6 = arith.constant 0 : index
    %c0_7 = arith.constant 0 : index
    %8 = vector.load %arg4[%c0_6, %c0_7] : memref<1x128xf32, #tpu.memory_space<vmem>>, vector<1x128xf32>
    %9 = vector.broadcast %8 : vector<1x128xf32> to vector<128x128xf32>
    %10 = arith.mulf %7, %9 : vector<128x128xf32>
    %cst_8 = arith.constant dense<0.000000e+00> : vector<128xf32>
    %11 = vector.multi_reduction <add>, %10, %cst_8 [1] : vector<128x128xf32> to vector<128xf32>
    %c0_9 = arith.constant 0 : index
    %12 = memref.load %arg5[%c0_9] : memref<1xf32, #tpu.memory_space<smem>>
    %13 = vector.broadcast %12 : f32 to vector<128xf32>
    %14 = arith.addf %11, %13 : vector<128xf32>
    %15 = arith.negf %14 : vector<128xf32>
    %16 = math.exp %15 : vector<128xf32>
    %cst_10 = arith.constant 1.000000e+00 : f32
    %17 = vector.broadcast %cst_10 : f32 to vector<128xf32>
    %18 = arith.addf %17, %16 : vector<128xf32>
    %19 = arith.divf %17, %18 : vector<128xf32>
    %20 = vector.shape_cast %19 : vector<128xf32> to vector<1x128xf32>
    %c0_11 = arith.constant 0 : index
    %c0_12 = arith.constant 0 : index
    %21 = vector.load %arg6[%c0_11, %c0_12] : memref<1x128xf32, #tpu.memory_space<vmem>>, vector<1x128xf32>
    tpu.vector_store %arg6[%c0_11, %c0_12], %20 {strides = array<i32>} : memref<1x128xf32, #tpu.memory_space<vmem>>, vector<1x128xf32>,
    return
  }
  func.func @transform_0(%arg0: i32) -> (i32, i32) {
    %c0_i32 = arith.constant 0 : i32
    %c0_i32_0 = arith.constant 0 : i32
    return %arg0, %c0_i32 : i32, i32
  }
  func.func @transform_1(%arg0: i32) -> (i32, i32) {
    %c0_i32 = arith.constant 0 : i32
    %c0_i32_0 = arith.constant 0 : i32
    %c0_i32_1 = arith.constant 0 : i32
    return %c0_i32, %c0_i32_0 : i32, i32
  }
  func.func @transform_2(%arg0: i32) -> (i32, i32) {
    %c0_i32 = arith.constant 0 : i32
    %c0_i32_0 = arith.constant 0 : i32
    %c0_i32_1 = arith.constant 0 : i32
    return %c0_i32, %c0_i32_0 : i32, i32
  }
  func.func @transform_3(%arg0: i32) -> (i32, i32) {
    %c0_i32 = arith.constant 0 : i32
    %c0_i32_0 = arith.constant 0 : i32
    %c0_i32_1 = arith.constant 0 : i32
    return %c0_i32, %c0_i32_0 : i32, i32
  }
  func.func @transform_4(%arg0: i32) -> i32 {
    %c0_i32 = arith.constant 0 : i32
    %c0_i32_0 = arith.constant 0 : i32
    return %c0_i32 : i32
  }
  func.func @transform_5(%arg0: i32) -> (i32, i32) {
    %c0_i32 = arith.constant 0 : i32
    %c0_i32_0 = arith.constant 0 : i32
    return %arg0, %c0_i32 : i32, i32
  }
}

</mosaic_0001>

<llo_original>
// kernel: relation_network.1
$region0: #{relation_network.1}
  #allocation0 [shape = 'u32[]', space=smem, size = 0x4, offset = 0x4, fixed_abs, tag = 'smem constant byte address 0x4 - core index']
  #allocation1 [shape = 'u32[144,128]{1,0:T(1,128)}', space=vmem, size = 0x12000, scoped, tag = 'internal scratch']
  #allocation2 [shape = 'f32[1]{0:T(128)S(6)}', space=smem, size = 0x200, scoped, tag = 'scoped memory for relation_network.1']
  %s0 = inlined_call_operand.vmem [shape: f32[128,128], index: 0, kind: input, shape index: {}]
  %s1 = inlined_call_operand.vmem [shape: f32[128,128], index: 1, kind: input, shape index: {}]
  %s2 = inlined_call_operand.vmem [shape: f32[1,128], index: 2, kind: input, shape index: {}]
  %s3 = inlined_call_operand.vmem [shape: f32[1,128], index: 3, kind: input, shape index: {}]
  %s4 = inlined_call_operand.<no memory space> [shape: f32[1], index: 4, kind: input, shape index: {}]
  %s5 = inlined_call_operand.vmem [shape: f32[1,128], index: 5, kind: output, shape index: {}]
  %s6 = sld [smem:[#allocation0]]
  $region30: #{relation_network.1} parent=0
    _
  %s8 = ssub.s32 1, %s6
  %s9 = scalar_select 0, %s8, %s6
  %10 = sst [smem:[#allocation2]] %s4
  // Predicated region
  $region2: #{relation_network.1} parent=0 // pred_check
    _
  $region3: #{relation_network.1} parent=0 // pred_check_branch
    %12 = sbr.rel (0) target = $region5
  $region4: #{relation_network.1} parent=0 // pred_region
    _
  $region5: #{relation_network.1} parent=0 // pred_fallthru
    _
  // Predicated region
  $region6: #{relation_network.1} parent=0 // pred_check
    _
  $region7: #{relation_network.1} parent=0 // pred_check_branch
    %14 = sbr.rel (0) target = $region9
  $region8: #{relation_network.1} parent=0 // pred_region
    _
  $region9: #{relation_network.1} parent=0 // pred_fallthru
    _
  // Predicated region
  $region10: #{relation_network.1} parent=0 // pred_check
    _
  $region11: #{relation_network.1} parent=0 // pred_check_branch
    %16 = sbr.rel (0) target = $region13
  $region12: #{relation_network.1} parent=0 // pred_region
    _
  $region13: #{relation_network.1} parent=0 // pred_fallthru
    _
  // Predicated region
  $region14: #{relation_network.1} parent=0 // pred_check
    _
  $region15: #{relation_network.1} parent=0 // pred_check_branch
    %18 = sbr.rel (0) target = $region17
  $region16: #{relation_network.1} parent=0 // pred_region
    _
  $region17: #{relation_network.1} parent=0 // pred_fallthru
    _
  // Predicated region
  $region18: #{relation_network.1} parent=0 // pred_check
    _
  $region19: #{relation_network.1} parent=0 // pred_check_branch
    %20 = sbr.rel (0) target = $region21
  $region20: #{relation_network.1} parent=0 // pred_region
    _
  $region21: #{relation_network.1} parent=0 // pred_fallthru
    _
  %v21 = vld [vmem:[%s0] sm:$0xff]
  %v22 = vld [vmem:[%s0 + $0x8] sm:$0xff]
  %v23 = vld [vmem:[%s0 + $0x10] sm:$0xff]
  %v24 = vld [vmem:[%s0 + $0x18] sm:$0xff]
  %v25 = vld [vmem:[%s0 + $0x20] sm:$0xff]
  %v26 = vld [vmem:[%s0 + $0x28] sm:$0xff]
  %v27 = vld [vmem:[%s0 + $0x30] sm:$0xff]
  %v28 = vld [vmem:[%s0 + $0x38] sm:$0xff]
  %v29 = vld [vmem:[%s0 + $0x40] sm:$0xff]
  %v30 = vld [vmem:[%s0 + $0x48] sm:$0xff]
  %v31 = vld [vmem:[%s0 + $0x50] sm:$0xff]
  %v32 = vld [vmem:[%s0 + $0x58] sm:$0xff]
  %v33 = vld [vmem:[%s0 + $0x60] sm:$0xff]
  %v34 = vld [vmem:[%s0 + $0x68] sm:$0xff]
  %v35 = vld [vmem:[%s0 + $0x70] sm:$0xff]
  %v36 = vld [vmem:[%s0 + $0x78] sm:$0xff]
  %v37 = vld [vmem:[%s1] sm:$0xff]
  %v38 = vld [vmem:[%s1 + $0x8] sm:$0xff]
  %v39 = vld [vmem:[%s1 + $0x10] sm:$0xff]
  %v40 = vld [vmem:[%s1 + $0x18] sm:$0xff]
  %v41 = vld [vmem:[%s1 + $0x20] sm:$0xff]
  %v42 = vld [vmem:[%s1 + $0x28] sm:$0xff]
  %v43 = vld [vmem:[%s1 + $0x30] sm:$0xff]
  %v44 = vld [vmem:[%s1 + $0x38] sm:$0xff]
  %v45 = vld [vmem:[%s1 + $0x40] sm:$0xff]
  %v46 = vld [vmem:[%s1 + $0x48] sm:$0xff]
  %v47 = vld [vmem:[%s1 + $0x50] sm:$0xff]
  %v48 = vld [vmem:[%s1 + $0x58] sm:$0xff]
  %v49 = vld [vmem:[%s1 + $0x60] sm:$0xff]
  %v50 = vld [vmem:[%s1 + $0x68] sm:$0xff]
  %v51 = vld [vmem:[%s1 + $0x70] sm:$0xff]
  %v52 = vld [vmem:[%s1 + $0x78] sm:$0xff]
  %v53 = vld [vmem:[%s2] sm:$0x1]
  %v55 = vlaneseq
  %v56 = vshrl.u32 %v55, 7
  %v57 = vsub.s32 0, %v56
  %v58 = vrot.slane %v53, %v57
  %60 = vmatprep.subr.mxu0 0.0
  %61 = vmatpush1.msra.mxu0 %v37
  %62 = vmatprep.subr.mxu0 0.0
  %63 = vmatpush1.msra.mxu0 %v38
  %64 = vmatprep.subr.mxu0 0.0
  %65 = vmatpush1.msra.mxu0 %v39
  %66 = vmatprep.subr.mxu0 0.0
  %67 = vmatpush1.msra.mxu0 %v40
  %68 = vmatprep.subr.mxu0 0.0
  %69 = vmatpush1.msra.mxu0 %v41
  %70 = vmatprep.subr.mxu0 0.0
  %71 = vmatpush1.msra.mxu0 %v42
  %72 = vmatprep.subr.mxu0 0.0
  %73 = vmatpush1.msra.mxu0 %v43
  %74 = vmatprep.subr.mxu0 0.0
  %75 = vmatpush1.msra.mxu0 %v44
  %76 = vmatprep.subr.mxu0 0.0
  %77 = vmatpush1.msra.mxu0 %v45
  %78 = vmatprep.subr.mxu0 0.0
  %79 = vmatpush1.msra.mxu0 %v46
  %80 = vmatprep.subr.mxu0 0.0
  %81 = vmatpush1.msra.mxu0 %v47
  %82 = vmatprep.subr.mxu0 0.0
  %83 = vmatpush1.msra.mxu0 %v48
  %84 = vmatprep.subr.mxu0 0.0
  %85 = vmatpush1.msra.mxu0 %v49
  %86 = vmatprep.subr.mxu0 0.0
  %87 = vmatpush1.msra.mxu0 %v50
  %88 = vmatprep.subr.mxu0 0.0
  %89 = vmatpush1.msra.mxu0 %v51
  %90 = vmatprep.subr.mxu0 0.0
  %91 = vmatpush1.msra.mxu0 %v52
  %92 = vmatprep.subr.mxu0 0.0
  %93 = vmatpush1.msra.mxu0 0.0
  %94 = vmatprep.subr.mxu0 0.0
  %95 = vmatpush1.msra.mxu0 0.0
  %96 = vmatprep.subr.mxu0 0.0
  %97 = vmatpush1.msra.mxu0 0.0
  %98 = vmatprep.subr.mxu0 0.0
  %99 = vmatpush1.msra.mxu0 0.0
  %100 = vmatprep.subr.mxu0 0.0
  %101 = vmatpush1.msra.mxu0 0.0
  %102 = vmatprep.subr.mxu0 0.0
  %103 = vmatpush1.msra.mxu0 0.0
  %104 = vmatprep.subr.mxu0 0.0
  %105 = vmatpush1.msra.mxu0 0.0
  %106 = vmatprep.subr.mxu0 0.0
  %107 = vmatpush1.msra.mxu0 0.0
  %108 = vmatprep.subr.mxu0 0.0
  %109 = vmatpush1.msra.mxu0 0.0
  %110 = vmatprep.subr.mxu0 0.0
  %111 = vmatpush1.msra.mxu0 0.0
  %112 = vmatprep.subr.mxu0 0.0
  %113 = vmatpush1.msra.mxu0 0.0
  %114 = vmatprep.subr.mxu0 0.0
  %115 = vmatpush1.msra.mxu0 0.0
  %116 = vmatprep.subr.mxu0 0.0
  %117 = vmatpush1.msra.mxu0 0.0
  %118 = vmatprep.subr.mxu0 0.0
  %119 = vmatpush1.msra.mxu0 0.0
  %120 = vmatprep.subr.mxu0 0.0
  %121 = vmatpush1.msra.mxu0 0.0
  %122 = vmatprep.subr.mxu0 0.0
  %123 = vmatpush1.msra.mxu0 0.0
  %124 = vmatprep.mubr.f32.mxu0 0.0
  %125 = vmatmul.mubr.f32.gmra.mrb[0].mxu0 %v21
  %v126 = vpop.f32.mrb[0].mxu0
  %v127 = vadd.f32 %v58, %v126
  %v128 = vpop.f32.mrb[0].mxu0
  %129 = vmatprep.mubr.f32.mxu0 0.0
  %130 = vmatmul.mubr.f32.gmra.mrb[0].mxu0 %v22
  %v131 = vpop.f32.mrb[0].mxu0
  %v132 = vadd.f32 %v58, %v131
  %v133 = vpop.f32.mrb[0].mxu0
  %134 = vmatprep.mubr.f32.mxu0 0.0
  %135 = vmatmul.mubr.f32.gmra.mrb[0].mxu0 %v23
  %v136 = vpop.f32.mrb[0].mxu0
  %v137 = vadd.f32 %v58, %v136
  %v138 = vpop.f32.mrb[0].mxu0
  %139 = vmatprep.mubr.f32.mxu0 0.0
  %140 = vmatmul.mubr.f32.gmra.mrb[0].mxu0 %v24
  %v141 = vpop.f32.mrb[0].mxu0
  %v142 = vadd.f32 %v58, %v141
  %v143 = vpop.f32.mrb[0].mxu0
  %144 = vmatprep.mubr.f32.mxu0 0.0
  %145 = vmatmul.mubr.f32.gmra.mrb[0].mxu0 %v25
  %v146 = vpop.f32.mrb[0].mxu0
  %v147 = vadd.f32 %v58, %v146
  %v148 = vpop.f32.mrb[0].mxu0
  %149 = vmatprep.mubr.f32.mxu0 0.0
  %150 = vmatmul.mubr.f32.gmra.mrb[0].mxu0 %v26
  %v151 = vpop.f32.mrb[0].mxu0
  %v152 = vadd.f32 %v58, %v151
  %v153 = vpop.f32.mrb[0].mxu0
  %154 = vmatprep.mubr.f32.mxu0 0.0
  %155 = vmatmul.mubr.f32.gmra.mrb[0].mxu0 %v27
  %v156 = vpop.f32.mrb[0].mxu0
  %v157 = vadd.f32 %v58, %v156
  %v158 = vpop.f32.mrb[0].mxu0
  %159 = vmatprep.mubr.f32.mxu0 0.0
  %160 = vmatmul.mubr.f32.gmra.mrb[0].mxu0 %v28
  %v161 = vpop.f32.mrb[0].mxu0
  %v162 = vadd.f32 %v58, %v161
  %v163 = vpop.f32.mrb[0].mxu0
  %164 = vmatprep.mubr.f32.mxu0 0.0
  %165 = vmatmul.mubr.f32.gmra.mrb[0].mxu0 %v29
  %v166 = vpop.f32.mrb[0].mxu0
  %v167 = vadd.f32 %v58, %v166
  %v168 = vpop.f32.mrb[0].mxu0
  %169 = vmatprep.mubr.f32.mxu0 0.0
  %170 = vmatmul.mubr.f32.gmra.mrb[0].mxu0 %v30
  %v171 = vpop.f32.mrb[0].mxu0
  %v172 = vadd.f32 %v58, %v171
  %v173 = vpop.f32.mrb[0].mxu0
  %174 = vmatprep.mubr.f32.mxu0 0.0
  %175 = vmatmul.mubr.f32.gmra.mrb[0].mxu0 %v31
  %v176 = vpop.f32.mrb[0].mxu0
  %v177 = vadd.f32 %v58, %v176
  %v178 = vpop.f32.mrb[0].mxu0
  %179 = vmatprep.mubr.f32.mxu0 0.0
  %180 = vmatmul.mubr.f32.gmra.mrb[0].mxu0 %v32
  %v181 = vpop.f32.mrb[0].mxu0
  %v182 = vadd.f32 %v58, %v181
  %v183 = vpop.f32.mrb[0].mxu0
  %184 = vmatprep.mubr.f32.mxu0 0.0
  %185 = vmatmul.mubr.f32.gmra.mrb[0].mxu0 %v33
  %v186 = vpop.f32.mrb[0].mxu0
  %v187 = vadd.f32 %v58, %v186
  %v188 = vpop.f32.mrb[0].mxu0
  %189 = vmatprep.mubr.f32.mxu0 0.0
  %190 = vmatmul.mubr.f32.gmra.mrb[0].mxu0 %v34
  %v191 = vpop.f32.mrb[0].mxu0
  %v192 = vadd.f32 %v58, %v191
  %v193 = vpop.f32.mrb[0].mxu0
  %194 = vmatprep.mubr.f32.mxu0 0.0
  %195 = vmatmul.mubr.f32.gmra.mrb[0].mxu0 %v35
  %v196 = vpop.f32.mrb[0].mxu0
  %v197 = vadd.f32 %v58, %v196
  %v198 = vpop.f32.mrb[0].mxu0
  %199 = vmatprep.mubr.f32.mxu0 0.0
  %200 = vmatmul.mubr.f32.gmra.mrb[0].mxu0 %v36
  %v201 = vpop.f32.mrb[0].mxu0
  %v202 = vadd.f32 %v58, %v201
  %v203 = vpop.f32.mrb[0].mxu0
  %204 = vdwg.mxu0
  %v205 = vmax.f32 %v127, 0.0
  %v206 = vmax.f32 %v132, 0.0
  %v207 = vmax.f32 %v137, 0.0
  %v208 = vmax.f32 %v142, 0.0
  %v209 = vmax.f32 %v147, 0.0
  %v210 = vmax.f32 %v152, 0.0
  %v211 = vmax.f32 %v157, 0.0
  %v212 = vmax.f32 %v162, 0.0
  %v213 = vmax.f32 %v167, 0.0
  %v214 = vmax.f32 %v172, 0.0
  %v215 = vmax.f32 %v177, 0.0
  %v216 = vmax.f32 %v182, 0.0
  %v217 = vmax.f32 %v187, 0.0
  %v218 = vmax.f32 %v192, 0.0
  %v219 = vmax.f32 %v197, 0.0
  %v220 = vmax.f32 %v202, 0.0
  %v221 = vld [vmem:[%s3] sm:$0x1]
  %v223 = vlaneseq
  %v224 = vshrl.u32 %v223, 7
  %v225 = vsub.s32 0, %v224
  %v226 = vrot.slane %v221, %v225
  %v228 = vmul.f32 %v205, %v226
  %v229 = vmul.f32 %v206, %v226
  %v230 = vmul.f32 %v207, %v226
  %v231 = vmul.f32 %v208, %v226
  %v232 = vmul.f32 %v209, %v226
  %v233 = vmul.f32 %v210, %v226
  %v234 = vmul.f32 %v211, %v226
  %v235 = vmul.f32 %v212, %v226
  %v236 = vmul.f32 %v213, %v226
  %v237 = vmul.f32 %v214, %v226
  %v238 = vmul.f32 %v215, %v226
  %v239 = vmul.f32 %v216, %v226
  %v240 = vmul.f32 %v217, %v226
  %v241 = vmul.f32 %v218, %v226
  %v242 = vmul.f32 %v219, %v226
  %v243 = vmul.f32 %v220, %v226
  %244 = vadd.xlane.f32.xlu0 %v228
  %v245 = vpop.xlane.xlu0 %244
  %246 = vadd.xlane.f32.xlu0 %v229
  %v247 = vpop.xlane.xlu0 %246
  %248 = vadd.xlane.f32.xlu0 %v230
  %v249 = vpop.xlane.xlu0 %248
  %250 = vadd.xlane.f32.xlu0 %v231
  %v251 = vpop.xlane.xlu0 %250
  %252 = vadd.xlane.f32.xlu0 %v232
  %v253 = vpop.xlane.xlu0 %252
  %254 = vadd.xlane.f32.xlu0 %v233
  %v255 = vpop.xlane.xlu0 %254
  %256 = vadd.xlane.f32.xlu0 %v234
  %v257 = vpop.xlane.xlu0 %256
  %258 = vadd.xlane.f32.xlu0 %v235
  %v259 = vpop.xlane.xlu0 %258
  %260 = vadd.xlane.f32.xlu0 %v236
  %v261 = vpop.xlane.xlu0 %260
  %262 = vadd.xlane.f32.xlu0 %v237
  %v263 = vpop.xlane.xlu0 %262
  %264 = vadd.xlane.f32.xlu0 %v238
  %v265 = vpop.xlane.xlu0 %264
  %266 = vadd.xlane.f32.xlu0 %v239
  %v267 = vpop.xlane.xlu0 %266
  %268 = vadd.xlane.f32.xlu0 %v240
  %v269 = vpop.xlane.xlu0 %268
  %270 = vadd.xlane.f32.xlu0 %v241
  %v271 = vpop.xlane.xlu0 %270
  %272 = vadd.xlane.f32.xlu0 %v242
  %v273 = vpop.xlane.xlu0 %272
  %274 = vadd.xlane.f32.xlu0 %v243
  %v275 = vpop.xlane.xlu0 %274
  %s276 = sld [smem:[#allocation2]]
  %v277 = vstv %s276
  %v278 = vadd.f32 %v245, %v277
  %v279 = vadd.f32 %v247, %v277
  %v280 = vadd.f32 %v249, %v277
  %v281 = vadd.f32 %v251, %v277
  %v282 = vadd.f32 %v253, %v277
  %v283 = vadd.f32 %v255, %v277
  %v284 = vadd.f32 %v257, %v277
  %v285 = vadd.f32 %v259, %v277
  %v286 = vadd.f32 %v261, %v277
  %v287 = vadd.f32 %v263, %v277
  %v288 = vadd.f32 %v265, %v277
  %v289 = vadd.f32 %v267, %v277
  %v290 = vadd.f32 %v269, %v277
  %v291 = vadd.f32 %v271, %v277
  %v292 = vadd.f32 %v273, %v277
  %v293 = vadd.f32 %v275, %v277
  %v294 = vxor.u32 %v278, 2147483648
  %v295 = vxor.u32 %v279, 2147483648
  %v296 = vxor.u32 %v280, 2147483648
  %v297 = vxor.u32 %v281, 2147483648
  %v298 = vxor.u32 %v282, 2147483648
  %v299 = vxor.u32 %v283, 2147483648
  %v300 = vxor.u32 %v284, 2147483648
  %v301 = vxor.u32 %v285, 2147483648
  %v302 = vxor.u32 %v286, 2147483648
  %v303 = vxor.u32 %v287, 2147483648
  %v304 = vxor.u32 %v288, 2147483648
  %v305 = vxor.u32 %v289, 2147483648
  %v306 = vxor.u32 %v290, 2147483648
  %v307 = vxor.u32 %v291, 2147483648
  %v308 = vxor.u32 %v292, 2147483648
  %v309 = vxor.u32 %v293, 2147483648
  %v310 = vmul.f32 %v294, 1.442695
  %v311 = vpow.pop %v310
  %v312 = vmul.f32 %v295, 1.442695
  %v313 = vpow.pop %v312
  %v314 = vmul.f32 %v296, 1.442695
  %v315 = vpow.pop %v314
  %v316 = vmul.f32 %v297, 1.442695
  %v317 = vpow.pop %v316
  %v318 = vmul.f32 %v298, 1.442695
  %v319 = vpow.pop %v318
  %v320 = vmul.f32 %v299, 1.442695
  %v321 = vpow.pop %v320
  %v322 = vmul.f32 %v300, 1.442695
  %v323 = vpow.pop %v322
  %v324 = vmul.f32 %v301, 1.442695
  %v325 = vpow.pop %v324
  %v326 = vmul.f32 %v302, 1.442695
  %v327 = vpow.pop %v326
  %v328 = vmul.f32 %v303, 1.442695
  %v329 = vpow.pop %v328
  %v330 = vmul.f32 %v304, 1.442695
  %v331 = vpow.pop %v330
  %v332 = vmul.f32 %v305, 1.442695
  %v333 = vpow.pop %v332
  %v334 = vmul.f32 %v306, 1.442695
  %v335 = vpow.pop %v334
  %v336 = vmul.f32 %v307, 1.442695
  %v337 = vpow.pop %v336
  %v338 = vmul.f32 %v308, 1.442695
  %v339 = vpow.pop %v338
  %v340 = vmul.f32 %v309, 1.442695
  %v341 = vpow.pop %v340
  %v342 = vadd.f32 %v311, 1.0
  %v343 = vadd.f32 %v313, 1.0
  %v344 = vadd.f32 %v315, 1.0
  %v345 = vadd.f32 %v317, 1.0
  %v346 = vadd.f32 %v319, 1.0
  %v347 = vadd.f32 %v321, 1.0
  %v348 = vadd.f32 %v323, 1.0
  %v349 = vadd.f32 %v325, 1.0
  %v350 = vadd.f32 %v327, 1.0
  %v351 = vadd.f32 %v329, 1.0
  %v352 = vadd.f32 %v331, 1.0
  %v353 = vadd.f32 %v333, 1.0
  %v354 = vadd.f32 %v335, 1.0
  %v355 = vadd.f32 %v337, 1.0
  %v356 = vadd.f32 %v339, 1.0
  %v357 = vadd.f32 %v341, 1.0
  %v358 = vrcp.pop %v342
  %v359 = vmul.f32 1.0, %v358
  %v360 = vrcp.pop %v343
  %v361 = vmul.f32 1.0, %v360
  %v362 = vrcp.pop %v344
  %v363 = vmul.f32 1.0, %v362
  %v364 = vrcp.pop %v345
  %v365 = vmul.f32 1.0, %v364
  %v366 = vrcp.pop %v346
  %v367 = vmul.f32 1.0, %v366
  %v368 = vrcp.pop %v347
  %v369 = vmul.f32 1.0, %v368
  %v370 = vrcp.pop %v348
  %v371 = vmul.f32 1.0, %v370
  %v372 = vrcp.pop %v349
  %v373 = vmul.f32 1.0, %v372
  %v374 = vrcp.pop %v350
  %v375 = vmul.f32 1.0, %v374
  %v376 = vrcp.pop %v351
  %v377 = vmul.f32 1.0, %v376
  %v378 = vrcp.pop %v352
  %v379 = vmul.f32 1.0, %v378
  %v380 = vrcp.pop %v353
  %v381 = vmul.f32 1.0, %v380
  %v382 = vrcp.pop %v354
  %v383 = vmul.f32 1.0, %v382
  %v384 = vrcp.pop %v355
  %v385 = vmul.f32 1.0, %v384
  %v386 = vrcp.pop %v356
  %v387 = vmul.f32 1.0, %v386
  %v388 = vrcp.pop %v357
  %v389 = vmul.f32 1.0, %v388
  %v406 = vlaneseq
  %v407 = vand.u32 %v406, 127
  %v408 = vlaneseq
  %v409 = vshrl.u32 %v408, 7
  %v410 = vsub.s32 %v407, %v409
  %v411 = vrot.slane %v359, %v410
  %v412 = vadd.s32 %v407, 4294967288
  %v413 = vlaneseq
  %v414 = vshrl.u32 %v413, 7
  %v415 = vsub.s32 %v412, %v414
  %v416 = vrot.slane %v361, %v415
  %vm417 = vcmask 130112
  %v418 = vsel %vm417, %v416, %v411
  %v419 = vadd.s32 %v407, 4294967280
  %v420 = vlaneseq
  %v421 = vshrl.u32 %v420, 7
  %v422 = vsub.s32 %v419, %v421
  %v423 = vrot.slane %v363, %v422
  %vm424 = vcmask 195712
  %v425 = vsel %vm424, %v423, %v418
  %v426 = vadd.s32 %v407, 4294967272
  %v427 = vlaneseq
  %v428 = vshrl.u32 %v427, 7
  %v429 = vsub.s32 %v426, %v428
  %v430 = vrot.slane %v365, %v429
  %vm431 = vcmask 261312
  %v432 = vsel %vm431, %v430, %v425
  %v433 = vadd.s32 %v407, 4294967264
  %v434 = vlaneseq
  %v435 = vshrl.u32 %v434, 7
  %v436 = vsub.s32 %v433, %v435
  %v437 = vrot.slane %v367, %v436
  %vm438 = vcmask 326912
  %v439 = vsel %vm438, %v437, %v432
  %v440 = vadd.s32 %v407, 4294967256
  %v441 = vlaneseq
  %v442 = vshrl.u32 %v441, 7
  %v443 = vsub.s32 %v440, %v442
  %v444 = vrot.slane %v369, %v443
  %vm445 = vcmask 392512
  %v446 = vsel %vm445, %v444, %v439
  %v447 = vadd.s32 %v407, 4294967248
  %v448 = vlaneseq
  %v449 = vshrl.u32 %v448, 7
  %v450 = vsub.s32 %v447, %v449
  %v451 = vrot.slane %v371, %v450
  %vm452 = vcmask 458112
  %v453 = vsel %vm452, %v451, %v446
  %v454 = vadd.s32 %v407, 4294967240
  %v455 = vlaneseq
  %v456 = vshrl.u32 %v455, 7
  %v457 = vsub.s32 %v454, %v456
  %v458 = vrot.slane %v373, %v457
  %vm459 = vcmask 523712
  %v460 = vsel %vm459, %v458, %v453
  %v461 = vadd.s32 %v407, 4294967232
  %v462 = vlaneseq
  %v463 = vshrl.u32 %v462, 7
  %v464 = vsub.s32 %v461, %v463
  %v465 = vrot.slane %v375, %v464
  %vm466 = vcmask 589312
  %v467 = vsel %vm466, %v465, %v460
  %v468 = vadd.s32 %v407, 4294967224
  %v469 = vlaneseq
  %v470 = vshrl.u32 %v469, 7
  %v471 = vsub.s32 %v468, %v470
  %v472 = vrot.slane %v377, %v471
  %vm473 = vcmask 654912
  %v474 = vsel %vm473, %v472, %v467
  %v475 = vadd.s32 %v407, 4294967216
  %v476 = vlaneseq
  %v477 = vshrl.u32 %v476, 7
  %v478 = vsub.s32 %v475, %v477
  %v479 = vrot.slane %v379, %v478
  %vm480 = vcmask 720512
  %v481 = vsel %vm480, %v479, %v474
  %v482 = vadd.s32 %v407, 4294967208
  %v483 = vlaneseq
  %v484 = vshrl.u32 %v483, 7
  %v485 = vsub.s32 %v482, %v484
  %v486 = vrot.slane %v381, %v485
  %vm487 = vcmask 786112
  %v488 = vsel %vm487, %v486, %v481
  %v489 = vadd.s32 %v407, 4294967200
  %v490 = vlaneseq
  %v491 = vshrl.u32 %v490, 7
  %v492 = vsub.s32 %v489, %v491
  %v493 = vrot.slane %v383, %v492
  %vm494 = vcmask 851712
  %v495 = vsel %vm494, %v493, %v488
  %v496 = vadd.s32 %v407, 4294967192
  %v497 = vlaneseq
  %v498 = vshrl.u32 %v497, 7
  %v499 = vsub.s32 %v496, %v498
  %v500 = vrot.slane %v385, %v499
  %vm501 = vcmask 917312
  %v502 = vsel %vm501, %v500, %v495
  %v503 = vadd.s32 %v407, 4294967184
  %v504 = vlaneseq
  %v505 = vshrl.u32 %v504, 7
  %v506 = vsub.s32 %v503, %v505
  %v507 = vrot.slane %v387, %v506
  %vm508 = vcmask 982912
  %v509 = vsel %vm508, %v507, %v502
  %v510 = vadd.s32 %v407, 4294967176
  %v511 = vlaneseq
  %v512 = vshrl.u32 %v511, 7
  %v513 = vsub.s32 %v510, %v512
  %v514 = vrot.slane %v389, %v513
  %vm515 = vcmask 1048512
  %v516 = vsel %vm515, %v514, %v509
  %518 = vst [vmem:[%s5] sm:$0x1] %v516
  // Predicated region
  $region22: #{relation_network.1} parent=0 // pred_check
    _
  $region23: #{relation_network.1} parent=0 // pred_check_branch
    %520 = sbr.rel (0) target = $region25
  $region24: #{relation_network.1} parent=0 // pred_region
    _
  $region25: #{relation_network.1} parent=0 // pred_fallthru
    _
  // Predicated region
  $region26: #{relation_network.1} parent=0 // pred_check
    _
  $region27: #{relation_network.1} parent=0 // pred_check_branch
    %522 = sbr.rel (0) target = $region29
  $region28: #{relation_network.1} parent=0 // pred_region
    _
  $region29: #{relation_network.1} parent=0 // pred_fallthru
    _

</llo_original>
